<compile_context>
chip_gen: v7x
topology: tpu7x:2x2x1
jax: 0.10.0
libtpu: 0.0.40
codegen_flags: <defaults>
</compile_context>

<pallas_src>
import jax
import jax.numpy as jnp
from jax.experimental import pallas as pl
from jax.experimental.pallas import tpu as pltpu

_SUBLANE = 8
_PER_BUF_BYTES = 2 * 1024 * 1024      # ~2 MiB per pipeline buffer (x4 live w/ double buffering)
_SMALL_ELEMS = 8 * 1024               # below this, plain JAX (launch overhead dominates)


def _double_kernel(x_ref, o_ref):
    x = x_ref[...]                    # single vld per vreg, then one VPU add
    o_ref[...] = x + x


def _round_up(x: int, m: int) -> int:
    return -(-x // m) * m


def _choose_slab_shape(n: int, last_dim: int):
    """Pick a lane-dense (rows, cols) 2D factorization of n elements."""
    for c in (4096, 2048, 1024, 512, 256, 128):
        if n % c == 0:
            return n // c, c
    # Fallback: keep the original trailing dim as the lane dim; the block
    # spans the full (possibly non-128-multiple) lane extent, which is legal.
    if last_dim > 0 and n % last_dim == 0:
        return n // last_dim, last_dim
    return 1, n


def _double_pallas(x2d: jax.Array) -> jax.Array:
    """Compute x + x on TPU via Pallas, streaming bytes-capped row tiles."""
    rows, cols = x2d.shape
    itemsize = x2d.dtype.itemsize
    n = rows * cols

    # Bytes-capped row tile; multiple of 8 sublanes unless it spans all rows.
    max_rows = max(_SUBLANE, _PER_BUF_BYTES // max(1, cols * itemsize))
    tile_rows = min(rows, max_rows)
    if tile_rows < rows:
        tile_rows = max(_SUBLANE, (tile_rows // _SUBLANE) * _SUBLANE)
    elif rows >= 2 * _SUBLANE and n * itemsize > 64 * 1024:
        # Whole tensor fits one block, but keep >= 2 grid steps so v7x's two
        # TensorCores both get work on reasonably sized inputs.
        half = -(-rows // 2)
        tile_rows = _round_up(half, _SUBLANE)

    grid = (pl.cdiv(rows, tile_rows),)   # ragged last block handled by Pallas masking

    return pl.pallas_call(
        _double_kernel,
        out_shape=jax.ShapeDtypeStruct((rows, cols), x2d.dtype),
        grid_spec=pltpu.PrefetchScalarGridSpec(
            num_scalar_prefetch=0,
            grid=grid,
            in_specs=[pl.BlockSpec((tile_rows, cols), lambda i: (i, 0))],
            out_specs=pl.BlockSpec((tile_rows, cols), lambda i: (i, 0)),
        ),
        compiler_params=pltpu.CompilerParams(
            dimension_semantics=("parallel",),
        ),
        cost_estimate=pl.CostEstimate(
            flops=n, transcendentals=0, bytes_accessed=2 * n * itemsize),
    )(x2d)


def simple_reshape_model(tensor: jax.Array, shape) -> jax.Array:
    """JAX/Pallas equivalent of SimpleReshapeModel.forward."""
    n = tensor.size
    if n < _SMALL_ELEMS:
        # Tiny tensors: pallas_call launch + DMA setup is pure overhead;
        # let XLA fuse the elementwise double into neighbors.
        return (tensor + tensor).reshape(shape)

    last_dim = tensor.shape[-1] if tensor.ndim >= 1 else n
    rows, cols = _choose_slab_shape(n, last_dim)
    x2d = tensor.reshape(rows, cols)
    combined = _double_pallas(x2d)
    # torch.reshape semantics (row-major, -1 inferred) == jnp reshape.
    return combined.reshape(shape)


if __name__ == "__main__":
    key = jax.random.PRNGKey(0)
    k1, k2 = jax.random.split(key)

    # Small case (bypass path — matches the scale of the original torch_glow test).
    x_small = jax.random.normal(k1, (2, 4, 16, 16), dtype=jnp.float32)
    shape_small = (2, -1)
    out_small = jax.block_until_ready(simple_reshape_model(x_small, shape_small))
    ref_small = (x_small + x_small).reshape(shape_small)
    assert out_small.shape == ref_small.shape, (out_small.shape, ref_small.shape)
    assert jnp.allclose(out_small, ref_small), "small-case mismatch vs reference"

    # Larger case that exercises the Pallas kernel path (lane-dense slab: 8 x 4096).
    x_big = jax.random.normal(k2, (4, 4, 32, 64), dtype=jnp.float32)
    shape_big = (64, 512)
    out_big = jax.block_until_ready(simple_reshape_model(x_big, shape_big))
    ref_big = (x_big + x_big).reshape(shape_big)
    assert out_big.shape == ref_big.shape, (out_big.shape, ref_big.shape)
    assert jnp.allclose(out_big, ref_big), "big-case mismatch vs reference"

    print("KERNEL_OK")
</pallas_src>

<mosaic_0001>
module attributes {stable_mosaic.version = 11 : i64} {
  func.func @_double_kernel(%arg0: i32, %arg1: memref<8x4096xf32, #tpu.memory_space<vmem>>, %arg2: memref<8x4096xf32, #tpu.memory_space<vmem>>) attributes {dimension_semantics = [#tpu.dimension_semantics<parallel>], iteration_bounds = array<i64: 1>, scalar_prefetch = 0 : i64, scratch_operands = 0 : i64, tpu.core_type = #tpu.core_type<tc>, window_params = [{transform_indices = @transform_0, window_bounds = array<i64: 8, 4096>}, {transform_indices = @transform_1, window_bounds = array<i64: 8, 4096>}]} {
    %c0 = arith.constant 0 : index
    %c0_0 = arith.constant 0 : index
    %0 = vector.load %arg1[%c0, %c0_0] : memref<8x4096xf32, #tpu.memory_space<vmem>>, vector<8x4096xf32>
    %1 = arith.addf %0, %0 : vector<8x4096xf32>
    %c0_1 = arith.constant 0 : index
    %c0_2 = arith.constant 0 : index
    %2 = vector.load %arg2[%c0_1, %c0_2] : memref<8x4096xf32, #tpu.memory_space<vmem>>, vector<8x4096xf32>
    tpu.vector_store %arg2[%c0_1, %c0_2], %1 {strides = array<i32>} : memref<8x4096xf32, #tpu.memory_space<vmem>>, vector<8x4096xf32>,
    return
  }
  func.func @transform_0(%arg0: i32) -> (i32, i32) {
    %c0_i32 = arith.constant 0 : i32
    %c0_i32_0 = arith.constant 0 : i32
    return %arg0, %c0_i32 : i32, i32
  }
  func.func @transform_1(%arg0: i32) -> (i32, i32) {
    %c0_i32 = arith.constant 0 : i32
    %c0_i32_0 = arith.constant 0 : i32
    return %arg0, %c0_i32 : i32, i32
  }
}

</mosaic_0001>

<llo_original>
// kernel: tpu_custom_call.1
$region0: #{tpu_custom_call.1}
  #allocation0 [shape = 'u32[]', space=smem, size = 0x4, offset = 0x4, fixed_abs, tag = 'smem constant byte address 0x4 - core index']
  #allocation1 [shape = 'u32[144,128]{1,0:T(1,128)}', space=vmem, size = 0x12000, scoped, tag = 'internal scratch']
  %s0 = inlined_call_operand.hbm [shape: f32[8,4096], index: 0, kind: input, shape index: {}]
  %s1 = inlined_call_operand.hbm [shape: f32[8,4096], index: 1, kind: output, shape index: {}]
  %s2 = sld [smem:[#allocation0]]
  $region18: #{tpu_custom_call.1} parent=0
    _
  %s4 = ssub.s32 1, %s2
  %s5 = scalar_select 0, %s4, %s2
  $region1: #{tpu_custom_call.1} parent=0
    #allocation2 [shape = 'u8[131072]{0}', space=vmem, size = 0x20000, scoped, tag = 'input window, operand 0, single buffered']
    #allocation3 [shape = 's32[1]{0}', space=sflag, size = 0x4, scoped, tag = 'scoped memory for tpu_custom_call.1']
    #allocation4 [shape = 's32[1]{0}', space=sflag, size = 0x4, scoped, tag = 'scoped memory for tpu_custom_call.1']
    #allocation5 [shape = 'u8[131072]{0}', space=vmem, size = 0x20000, scoped, tag = 'output window, operand 0, single buffered']
    %6 = vsyncpa [#allocation3], 0
    %7 = vsyncpa [#allocation4], 0
    // Predicated region
    $region2: #{tpu_custom_call.1} parent=1 // pred_check
      _
    $region3: #{tpu_custom_call.1} parent=1 // pred_check_branch
      %9 = sbr.rel (0) target = $region5
    $region4: #{tpu_custom_call.1} parent=1 // pred_region
      %s11 = ssub.s32 4096, 4096
      %12 = vsyncadd [#allocation3], %s11
      %s14 = sshll.u32 [#allocation2], 4
      %s15 = int_to_ptr.vmem [resolvable:$true] %s14
      %17 = dma.hbm_to_vmem [thread:$0]  %s0, 4096, %s15, [#allocation3]
    $region5: #{tpu_custom_call.1} parent=1 // pred_fallthru
      _
    // Predicated region
    $region6: #{tpu_custom_call.1} parent=1 // pred_check
      _
    $region7: #{tpu_custom_call.1} parent=1 // pred_check_branch
      %19 = sbr.rel (0) target = $region9
    $region8: #{tpu_custom_call.1} parent=1 // pred_region
      %20 = dma.done [#allocation3], 4096
    $region9: #{tpu_custom_call.1} parent=1 // pred_fallthru
      _
    %v21 = vld [vmem:[#allocation2] sm:$0xff]
    %v22 = vld [vmem:[#allocation2 + $0x8] sm:$0xff]
    %v23 = vld [vmem:[#allocation2 + $0x10] sm:$0xff]
    %v24 = vld [vmem:[#allocation2 + $0x18] sm:$0xff]
    %v25 = vld [vmem:[#allocation2 + $0x20] sm:$0xff]
    %v26 = vld [vmem:[#allocation2 + $0x28] sm:$0xff]
    %v27 = vld [vmem:[#allocation2 + $0x30] sm:$0xff]
    %v28 = vld [vmem:[#allocation2 + $0x38] sm:$0xff]
    %v29 = vld [vmem:[#allocation2 + $0x40] sm:$0xff]
    %v30 = vld [vmem:[#allocation2 + $0x48] sm:$0xff]
    %v31 = vld [vmem:[#allocation2 + $0x50] sm:$0xff]
    %v32 = vld [vmem:[#allocation2 + $0x58] sm:$0xff]
    %v33 = vld [vmem:[#allocation2 + $0x60] sm:$0xff]
    %v34 = vld [vmem:[#allocation2 + $0x68] sm:$0xff]
    %v35 = vld [vmem:[#allocation2 + $0x70] sm:$0xff]
    %v36 = vld [vmem:[#allocation2 + $0x78] sm:$0xff]
    %v37 = vld [vmem:[#allocation2 + $0x80] sm:$0xff]
    %v38 = vld [vmem:[#allocation2 + $0x88] sm:$0xff]
    %v39 = vld [vmem:[#allocation2 + $0x90] sm:$0xff]
    %v40 = vld [vmem:[#allocation2 + $0x98] sm:$0xff]
    %v41 = vld [vmem:[#allocation2 + $0xa0] sm:$0xff]
    %v42 = vld [vmem:[#allocation2 + $0xa8] sm:$0xff]
    %v43 = vld [vmem:[#allocation2 + $0xb0] sm:$0xff]
    %v44 = vld [vmem:[#allocation2 + $0xb8] sm:$0xff]
    %v45 = vld [vmem:[#allocation2 + $0xc0] sm:$0xff]
    %v46 = vld [vmem:[#allocation2 + $0xc8] sm:$0xff]
    %v47 = vld [vmem:[#allocation2 + $0xd0] sm:$0xff]
    %v48 = vld [vmem:[#allocation2 + $0xd8] sm:$0xff]
    %v49 = vld [vmem:[#allocation2 + $0xe0] sm:$0xff]
    %v50 = vld [vmem:[#allocation2 + $0xe8] sm:$0xff]
    %v51 = vld [vmem:[#allocation2 + $0xf0] sm:$0xff]
    %v52 = vld [vmem:[#allocation2 + $0xf8] sm:$0xff]
    %v53 = vadd.f32 %v21, %v21
    %v54 = vadd.f32 %v22, %v22
    %v55 = vadd.f32 %v23, %v23
    %v56 = vadd.f32 %v24, %v24
    %v57 = vadd.f32 %v25, %v25
    %v58 = vadd.f32 %v26, %v26
    %v59 = vadd.f32 %v27, %v27
    %v60 = vadd.f32 %v28, %v28
    %v61 = vadd.f32 %v29, %v29
    %v62 = vadd.f32 %v30, %v30
    %v63 = vadd.f32 %v31, %v31
    %v64 = vadd.f32 %v32, %v32
    %v65 = vadd.f32 %v33, %v33
    %v66 = vadd.f32 %v34, %v34
    %v67 = vadd.f32 %v35, %v35
    %v68 = vadd.f32 %v36, %v36
    %v69 = vadd.f32 %v37, %v37
    %v70 = vadd.f32 %v38, %v38
    %v71 = vadd.f32 %v39, %v39
    %v72 = vadd.f32 %v40, %v40
    %v73 = vadd.f32 %v41, %v41
    %v74 = vadd.f32 %v42, %v42
    %v75 = vadd.f32 %v43, %v43
    %v76 = vadd.f32 %v44, %v44
    %v77 = vadd.f32 %v45, %v45
    %v78 = vadd.f32 %v46, %v46
    %v79 = vadd.f32 %v47, %v47
    %v80 = vadd.f32 %v48, %v48
    %v81 = vadd.f32 %v49, %v49
    %v82 = vadd.f32 %v50, %v50
    %v83 = vadd.f32 %v51, %v51
    %v84 = vadd.f32 %v52, %v52
    %85 = vst [vmem:[#allocation5] sm:$0xff] %v53
    %86 = vst [vmem:[#allocation5 + $0x8] sm:$0xff] %v54
    %87 = vst [vmem:[#allocation5 + $0x10] sm:$0xff] %v55
    %88 = vst [vmem:[#allocation5 + $0x18] sm:$0xff] %v56
    %89 = vst [vmem:[#allocation5 + $0x20] sm:$0xff] %v57
    %90 = vst [vmem:[#allocation5 + $0x28] sm:$0xff] %v58
    %91 = vst [vmem:[#allocation5 + $0x30] sm:$0xff] %v59
    %92 = vst [vmem:[#allocation5 + $0x38] sm:$0xff] %v60
    %93 = vst [vmem:[#allocation5 + $0x40] sm:$0xff] %v61
    %94 = vst [vmem:[#allocation5 + $0x48] sm:$0xff] %v62
    %95 = vst [vmem:[#allocation5 + $0x50] sm:$0xff] %v63
    %96 = vst [vmem:[#allocation5 + $0x58] sm:$0xff] %v64
    %97 = vst [vmem:[#allocation5 + $0x60] sm:$0xff] %v65
    %98 = vst [vmem:[#allocation5 + $0x68] sm:$0xff] %v66
    %99 = vst [vmem:[#allocation5 + $0x70] sm:$0xff] %v67
    %100 = vst [vmem:[#allocation5 + $0x78] sm:$0xff] %v68
    %101 = vst [vmem:[#allocation5 + $0x80] sm:$0xff] %v69
    %102 = vst [vmem:[#allocation5 + $0x88] sm:$0xff] %v70
    %103 = vst [vmem:[#allocation5 + $0x90] sm:$0xff] %v71
    %104 = vst [vmem:[#allocation5 + $0x98] sm:$0xff] %v72
    %105 = vst [vmem:[#allocation5 + $0xa0] sm:$0xff] %v73
    %106 = vst [vmem:[#allocation5 + $0xa8] sm:$0xff] %v74
    %107 = vst [vmem:[#allocation5 + $0xb0] sm:$0xff] %v75
    %108 = vst [vmem:[#allocation5 + $0xb8] sm:$0xff] %v76
    %109 = vst [vmem:[#allocation5 + $0xc0] sm:$0xff] %v77
    %110 = vst [vmem:[#allocation5 + $0xc8] sm:$0xff] %v78
    %111 = vst [vmem:[#allocation5 + $0xd0] sm:$0xff] %v79
    %112 = vst [vmem:[#allocation5 + $0xd8] sm:$0xff] %v80
    %113 = vst [vmem:[#allocation5 + $0xe0] sm:$0xff] %v81
    %114 = vst [vmem:[#allocation5 + $0xe8] sm:$0xff] %v82
    %115 = vst [vmem:[#allocation5 + $0xf0] sm:$0xff] %v83
    %116 = vst [vmem:[#allocation5 + $0xf8] sm:$0xff] %v84
    // Predicated region
    $region10: #{tpu_custom_call.1} parent=1 // pred_check
      _
    $region11: #{tpu_custom_call.1} parent=1 // pred_check_branch
      %118 = sbr.rel (0) target = $region13
    $region12: #{tpu_custom_call.1} parent=1 // pred_region
      %s120 = ssub.s32 4096, 4096
      %121 = vsyncadd [#allocation4], %s120
      %s123 = sshll.u32 [#allocation5], 4
      %s124 = int_to_ptr.vmem [resolvable:$true] %s123
      %126 = dma.vmem_to_hbm [thread:$0]  %s124, 4096, %s1, [#allocation4]
    $region13: #{tpu_custom_call.1} parent=1 // pred_fallthru
      _
    // Predicated region
    $region14: #{tpu_custom_call.1} parent=1 // pred_check
      _
    $region15: #{tpu_custom_call.1} parent=1 // pred_check_branch
      %128 = sbr.rel (0) target = $region17
    $region16: #{tpu_custom_call.1} parent=1 // pred_region
      %129 = dma.done [#allocation4], 4096
    $region17: #{tpu_custom_call.1} parent=1 // pred_fallthru
      _
    %130 = vsyncpa [#allocation3], 1
    %131 = vsyncpa [#allocation4], 1

</llo_original>
